<compile_context>
chip_gen: v6e
topology: v6e:2x2x1
jax: 0.10.0
libtpu: 0.0.40
codegen_flags: <defaults>
</compile_context>

<pallas_src>
import jax
import jax.numpy as jnp
from jax.experimental import pallas as pl
from jax.experimental.pallas import tpu as pltpu


_LANE = 128  # TPU lane width; row tiles must be a multiple of this.


def _make_link_predictor_kernel(num_layers, out_channels, compute_dtype):
    """Kernel for a fixed MLP depth; activations are (C, TILE_N) feature-major."""

    def kernel(*refs):
        # refs = (x_i, x_j, w0, b0, w1, b1, ..., w_{L-1}, b_{L-1}, out)
        xi_ref, xj_ref = refs[0], refs[1]
        out_ref = refs[-1]
        wb = refs[2:-1]

        # Elementwise "link feature": fully lane-dense (C_in, TILE_N).
        x = (xi_ref[...] * xj_ref[...]).astype(jnp.float32)

        # Hidden layers: Linear -> ReLU.  (Dropout is identity in eval mode.)
        # TODO(synk): training-mode dropout (stateful RNG mask) not implemented;
        #             forward matches model.eval() semantics.
        for l in range(num_layers - 1):
            w = wb[2 * l][...]                            # (H_out, H_in)
            b = wb[2 * l + 1][...]                        # (H_out, 1)
            z = jnp.dot(w.astype(compute_dtype), x.astype(compute_dtype),
                        preferred_element_type=jnp.float32)
            x = jnp.maximum(z + b, 0.0)                   # bias broadcasts over lanes

        # Final layer -> sigmoid.
        w = wb[2 * (num_layers - 1)][...]
        b = wb[2 * (num_layers - 1) + 1][...]
        if out_channels == 1:
            # A width-1 matmul would use 1 of 128/256 MXU output columns and
            # still pay a full MXU push+pop; use VPU multiply + sublane reduce.
            # (w is pre-transposed to (H, 1) by the wrapper.)
            logits = jnp.sum(x * w, axis=0, keepdims=True) + b   # (1, TILE_N)
        else:
            logits = jnp.dot(w.astype(compute_dtype), x.astype(compute_dtype),
                             preferred_element_type=jnp.float32) + b
        out_ref[...] = jax.nn.sigmoid(logits).astype(out_ref.dtype)

    return kernel


def link_predictor_forward(x_i, x_j, weights, biases, *, tile_n=1024,
                           use_bf16=False):
    """LinkPredictor forward pass (eval mode) as a single Pallas TPU kernel.

    Args:
      x_i, x_j: (N, in_channels) float32 link endpoint features.
      weights:  list of PyTorch-convention (out, in) float32 matrices.
      biases:   list of (out,) float32 vectors.
      tile_n:   rows per grid step (must be a multiple of 128).
      use_bf16: cast matmul operands to bfloat16 (f32 accumulation kept).
    Returns:
      (N, out_channels) float32 probabilities in [0, 1].
    """
    assert tile_n % _LANE == 0, "tile_n must be a multiple of the 128-lane width"
    num_layers = len(weights)
    N, c_in = x_i.shape
    out_channels = int(weights[-1].shape[0])

    # Feature-major, lane-dense layout: rows -> lanes, channels -> sublanes.
    xt_i = x_i.T
    xt_j = x_j.T

    # Pad the row axis so the grid divides it evenly; padding is sliced off
    # after the call.
    n_pad128 = pl.cdiv(N, _LANE) * _LANE
    tile_n = min(tile_n, n_pad128)
    n_padded = pl.cdiv(N, tile_n) * tile_n
    if n_padded != N:
        pad = ((0, 0), (0, n_padded - N))
        xt_i = jnp.pad(xt_i, pad)
        xt_j = jnp.pad(xt_j, pad)

    # Parameters: weights stay (out, in) so each layer is W @ X; biases become
    # (out, 1) columns; the width-1 final weight is pre-transposed to (H, 1).
    operands = [xt_i, xt_j]
    param_specs = []
    for l, (w, b) in enumerate(zip(weights, biases)):
        if l == num_layers - 1 and out_channels == 1:
            w = w.T                                       # (H, 1)
        b2d = b.reshape(-1, 1)                            # (out, 1)
        operands.append(w)
        operands.append(b2d)
        # Constant index_map -> parameters stay resident in VMEM across steps.
        param_specs.append(pl.BlockSpec(tuple(w.shape), lambda i: (0, 0)))
        param_specs.append(pl.BlockSpec(tuple(b2d.shape), lambda i: (0, 0)))

    grid = (n_padded // tile_n,)
    x_spec = pl.BlockSpec((c_in, tile_n), lambda i: (0, i))
    out_spec = pl.BlockSpec((out_channels, tile_n), lambda i: (0, i))

    compute_dtype = jnp.bfloat16 if use_bf16 else jnp.float32
    kernel = _make_link_predictor_kernel(num_layers, out_channels, compute_dtype)

    # Advisory cost estimate for XLA's scheduler.
    flops = 2 * n_padded * sum(int(w.shape[0]) * int(w.shape[1]) for w in weights)
    bytes_accessed = 4 * (2 * n_padded * c_in + n_padded * out_channels
                          + sum(int(w.size) + int(b.size)
                                for w, b in zip(weights, biases)))
    cost = pl.CostEstimate(flops=flops,
                           transcendentals=n_padded * out_channels,
                           bytes_accessed=bytes_accessed)

    out_t = pl.pallas_call(
        kernel,
        out_shape=jax.ShapeDtypeStruct((out_channels, n_padded), jnp.float32),
        grid=grid,
        in_specs=[x_spec, x_spec] + param_specs,
        out_specs=out_spec,
        compiler_params=pltpu.CompilerParams(
            dimension_semantics=("parallel",)),   # v7x megacore sharding
        cost_estimate=cost,
    )(*operands)

    return out_t[:, :N].T                          # back to (N, out_channels)


def init_link_predictor_params(key, in_channels, hidden_channels, out_channels,
                               num_layers):
    """Deterministic params in PyTorch convention: W is (out, in), b is (out,)."""
    dims = [in_channels] + [hidden_channels] * (num_layers - 1) + [out_channels]
    weights, biases = [], []
    for l in range(num_layers):
        fan_in, fan_out = dims[l], dims[l + 1]
        key, kw, kb = jax.random.split(key, 3)
        bound = 1.0 / float(fan_in) ** 0.5
        w = jax.random.uniform(kw, (fan_out, fan_in), jnp.float32, -bound, bound)
        b = jax.random.uniform(kb, (fan_out,), jnp.float32, -bound, bound)
        weights.append(w)
        biases.append(b)
    return weights, biases


def link_predictor_reference(x_i, x_j, weights, biases):
    """Pure-JAX reference (eval mode) for the correctness check."""
    x = x_i * x_j
    for w, b in zip(weights[:-1], biases[:-1]):
        x = jnp.maximum(x @ w.T + b, 0.0)
    x = x @ weights[-1].T + biases[-1]
    return jax.nn.sigmoid(x)


if __name__ == "__main__":
    # Small shapes consistent with the module's forward.
    in_channels = 32
    hidden_channels = 32
    out_channels = 1
    num_layers = 3
    N = 300  # not a multiple of 128 -> exercises row padding + slicing

    key = jax.random.PRNGKey(0)
    key, k_i, k_j, k_p = jax.random.split(key, 4)
    x_i = jax.random.normal(k_i, (N, in_channels), jnp.float32)
    x_j = jax.random.normal(k_j, (N, in_channels), jnp.float32)

    weights, biases = init_link_predictor_params(
        k_p, in_channels, hidden_channels, out_channels, num_layers)

    ref = link_predictor_reference(x_i, x_j, weights, biases)

    # f32 path: must match the reference tightly.
    out = jax.block_until_ready(
        link_predictor_forward(x_i, x_j, weights, biases, tile_n=1024))
    assert out.shape == (N, out_channels)
    assert jnp.allclose(out, ref, atol=1e-5, rtol=1e-5), "f32 mismatch vs reference"

    # bf16-MXU path (v6e/v7x friendly): f32 accumulation, looser tolerance.
    out_bf16 = jax.block_until_ready(
        link_predictor_forward(x_i, x_j, weights, biases, tile_n=1024,
                               use_bf16=True))
    assert out_bf16.shape == (N, out_channels)
    assert jnp.allclose(out_bf16, ref, atol=3e-2, rtol=3e-2), "bf16 mismatch"

    print("KERNEL_OK")
</pallas_src>

<mosaic_0001>
module attributes {stable_mosaic.version = 11 : i64} {
  func.func @kernel(%arg0: i32, %arg1: memref<32x384xf32, #tpu.memory_space<vmem>>, %arg2: memref<32x384xf32, #tpu.memory_space<vmem>>, %arg3: memref<32x32xf32, #tpu.memory_space<vmem>>, %arg4: memref<32x1xf32, #tpu.memory_space<vmem>>, %arg5: memref<32x32xf32, #tpu.memory_space<vmem>>, %arg6: memref<32x1xf32, #tpu.memory_space<vmem>>, %arg7: memref<32x1xf32, #tpu.memory_space<vmem>>, %arg8: memref<1x1xf32, #tpu.memory_space<vmem>>, %arg9: memref<1x384xf32, #tpu.memory_space<vmem>>) attributes {dimension_semantics = [#tpu.dimension_semantics<parallel>], iteration_bounds = array<i64: 1>, scalar_prefetch = 0 : i64, scratch_operands = 0 : i64, tpu.core_type = #tpu.core_type<tc>, window_params = [{transform_indices = @transform_0, window_bounds = array<i64: 32, 384>}, {transform_indices = @transform_1, window_bounds = array<i64: 32, 384>}, {pipeline_mode = #tpu.pipeline_mode<synchronous>, transform_indices = @transform_2, window_bounds = array<i64: 32, 32>}, {pipeline_mode = #tpu.pipeline_mode<synchronous>, transform_indices = @transform_3, window_bounds = array<i64: 32, 1>}, {pipeline_mode = #tpu.pipeline_mode<synchronous>, transform_indices = @transform_4, window_bounds = array<i64: 32, 32>}, {pipeline_mode = #tpu.pipeline_mode<synchronous>, transform_indices = @transform_5, window_bounds = array<i64: 32, 1>}, {pipeline_mode = #tpu.pipeline_mode<synchronous>, transform_indices = @transform_6, window_bounds = array<i64: 32, 1>}, {pipeline_mode = #tpu.pipeline_mode<synchronous>, transform_indices = @transform_7, window_bounds = array<i64: 1, 1>}, {transform_indices = @transform_8, window_bounds = array<i64: 1, 384>}]} {
    %c0 = arith.constant 0 : index
    %c0_0 = arith.constant 0 : index
    %0 = vector.load %arg1[%c0, %c0_0] : memref<32x384xf32, #tpu.memory_space<vmem>>, vector<32x384xf32>
    %c0_1 = arith.constant 0 : index
    %c0_2 = arith.constant 0 : index
    %1 = vector.load %arg2[%c0_1, %c0_2] : memref<32x384xf32, #tpu.memory_space<vmem>>, vector<32x384xf32>
    %2 = arith.mulf %0, %1 : vector<32x384xf32>
    %c0_3 = arith.constant 0 : index
    %c0_4 = arith.constant 0 : index
    %3 = vector.load %arg3[%c0_3, %c0_4] : memref<32x32xf32, #tpu.memory_space<vmem>>, vector<32x32xf32>
    %c0_5 = arith.constant 0 : index
    %c0_6 = arith.constant 0 : index
    %4 = vector.load %arg4[%c0_5, %c0_6] : memref<32x1xf32, #tpu.memory_space<vmem>>, vector<32x1xf32>
    %cst = arith.constant dense<0.000000e+00> : vector<32x384xf32>
    %5 = tpu.matmul %3, %2, %cst {dimension_numbers = #tpu.dot_dimension_numbers<[1], [0], [0], [1], [0, 0, 1, 1], [], []>} : vector<32x32xf32>, vector<32x384xf32>, vector<32x384xf32> -> vector<32x384xf32>
    %6 = vector.broadcast %4 : vector<32x1xf32> to vector<32x384xf32>
    %7 = arith.addf %5, %6 : vector<32x384xf32>
    %cst_7 = arith.constant 0.000000e+00 : f32
    %8 = vector.broadcast %cst_7 : f32 to vector<32x384xf32>
    %9 = arith.maximumf %7, %8 : vector<32x384xf32>
    %c0_8 = arith.constant 0 : index
    %c0_9 = arith.constant 0 : index
    %10 = vector.load %arg5[%c0_8, %c0_9] : memref<32x32xf32, #tpu.memory_space<vmem>>, vector<32x32xf32>
    %c0_10 = arith.constant 0 : index
    %c0_11 = arith.constant 0 : index
    %11 = vector.load %arg6[%c0_10, %c0_11] : memref<32x1xf32, #tpu.memory_space<vmem>>, vector<32x1xf32>
    %cst_12 = arith.constant dense<0.000000e+00> : vector<32x384xf32>
    %12 = tpu.matmul %10, %9, %cst_12 {dimension_numbers = #tpu.dot_dimension_numbers<[1], [0], [0], [1], [0, 0, 1, 1], [], []>} : vector<32x32xf32>, vector<32x384xf32>, vector<32x384xf32> -> vector<32x384xf32>
    %13 = vector.broadcast %11 : vector<32x1xf32> to vector<32x384xf32>
    %14 = arith.addf %12, %13 : vector<32x384xf32>
    %cst_13 = arith.constant 0.000000e+00 : f32
    %15 = vector.broadcast %cst_13 : f32 to vector<32x384xf32>
    %16 = arith.maximumf %14, %15 : vector<32x384xf32>
    %c0_14 = arith.constant 0 : index
    %c0_15 = arith.constant 0 : index
    %17 = vector.load %arg7[%c0_14, %c0_15] : memref<32x1xf32, #tpu.memory_space<vmem>>, vector<32x1xf32>
    %c0_16 = arith.constant 0 : index
    %c0_17 = arith.constant 0 : index
    %18 = vector.load %arg8[%c0_16, %c0_17] : memref<1x1xf32, #tpu.memory_space<vmem>>, vector<1x1xf32>
    %19 = vector.broadcast %17 : vector<32x1xf32> to vector<32x384xf32>
    %20 = arith.mulf %16, %19 : vector<32x384xf32>
    %cst_18 = arith.constant dense<0.000000e+00> : vector<384xf32>
    %21 = vector.multi_reduction <add>, %20, %cst_18 [0] : vector<32x384xf32> to vector<384xf32>
    %22 = vector.shape_cast %21 : vector<384xf32> to vector<1x384xf32>
    %23 = vector.broadcast %18 : vector<1x1xf32> to vector<1x384xf32>
    %24 = arith.addf %22, %23 : vector<1x384xf32>
    %25 = arith.negf %24 : vector<1x384xf32>
    %26 = math.exp %25 : vector<1x384xf32>
    %cst_19 = arith.constant 1.000000e+00 : f32
    %27 = vector.broadcast %cst_19 : f32 to vector<1x384xf32>
    %28 = arith.addf %27, %26 : vector<1x384xf32>
    %29 = arith.divf %27, %28 : vector<1x384xf32>
    %c0_20 = arith.constant 0 : index
    %c0_21 = arith.constant 0 : index
    %30 = vector.load %arg9[%c0_20, %c0_21] : memref<1x384xf32, #tpu.memory_space<vmem>>, vector<1x384xf32>
    tpu.vector_store %arg9[%c0_20, %c0_21], %29 {strides = array<i32>} : memref<1x384xf32, #tpu.memory_space<vmem>>, vector<1x384xf32>,
    return
  }
  func.func @transform_0(%arg0: i32) -> (i32, i32) {
    %c0_i32 = arith.constant 0 : i32
    %c0_i32_0 = arith.constant 0 : i32
    return %c0_i32, %arg0 : i32, i32
  }
  func.func @transform_1(%arg0: i32) -> (i32, i32) {
    %c0_i32 = arith.constant 0 : i32
    %c0_i32_0 = arith.constant 0 : i32
    return %c0_i32, %arg0 : i32, i32
  }
  func.func @transform_2(%arg0: i32) -> (i32, i32) {
    %c0_i32 = arith.constant 0 : i32
    %c0_i32_0 = arith.constant 0 : i32
    %c0_i32_1 = arith.constant 0 : i32
    return %c0_i32, %c0_i32_0 : i32, i32
  }
  func.func @transform_3(%arg0: i32) -> (i32, i32) {
    %c0_i32 = arith.constant 0 : i32
    %c0_i32_0 = arith.constant 0 : i32
    %c0_i32_1 = arith.constant 0 : i32
    return %c0_i32, %c0_i32_0 : i32, i32
  }
  func.func @transform_4(%arg0: i32) -> (i32, i32) {
    %c0_i32 = arith.constant 0 : i32
    %c0_i32_0 = arith.constant 0 : i32
    %c0_i32_1 = arith.constant 0 : i32
    return %c0_i32, %c0_i32_0 : i32, i32
  }
  func.func @transform_5(%arg0: i32) -> (i32, i32) {
    %c0_i32 = arith.constant 0 : i32
    %c0_i32_0 = arith.constant 0 : i32
    %c0_i32_1 = arith.constant 0 : i32
    return %c0_i32, %c0_i32_0 : i32, i32
  }
  func.func @transform_6(%arg0: i32) -> (i32, i32) {
    %c0_i32 = arith.constant 0 : i32
    %c0_i32_0 = arith.constant 0 : i32
    %c0_i32_1 = arith.constant 0 : i32
    return %c0_i32, %c0_i32_0 : i32, i32
  }
  func.func @transform_7(%arg0: i32) -> (i32, i32) {
    %c0_i32 = arith.constant 0 : i32
    %c0_i32_0 = arith.constant 0 : i32
    %c0_i32_1 = arith.constant 0 : i32
    return %c0_i32, %c0_i32_0 : i32, i32
  }
  func.func @transform_8(%arg0: i32) -> (i32, i32) {
    %c0_i32 = arith.constant 0 : i32
    %c0_i32_0 = arith.constant 0 : i32
    return %c0_i32, %arg0 : i32, i32
  }
}

</mosaic_0001>

<llo_original>
// kernel: tpu_custom_call.1
$region0: #{tpu_custom_call.1}
  #allocation0 [shape = 'u32[]', space=smem, size = 0x4, offset = 0x4, fixed_abs, tag = 'smem constant byte address 0x4 - core index']
  #allocation1 [shape = 'u32[144,128]{1,0:T(1,128)}', space=vmem, size = 0x12000, scoped, tag = 'internal scratch']
  #allocation2 [shape = 'f32[1,1]{1,0:T(1,128)S(1)}', space=vmem, size = 0x200, scoped, tag = 'scoped memory for tpu_custom_call.1']
  %s0 = inlined_call_operand.vmem [shape: f32[32,384], index: 0, kind: input, shape index: {}]
  %s1 = inlined_call_operand.hbm [shape: f32[32,384], index: 1, kind: input, shape index: {}]
  %s2 = inlined_call_operand.hbm [shape: f32[32,32], index: 2, kind: input, shape index: {}]
  %s3 = inlined_call_operand.vmem [shape: f32[32,1], index: 3, kind: input, shape index: {}]
  %s4 = inlined_call_operand.hbm [shape: f32[32,32], index: 4, kind: input, shape index: {}]
  %s5 = inlined_call_operand.vmem [shape: f32[32,1], index: 5, kind: input, shape index: {}]
  %s6 = inlined_call_operand.vmem [shape: f32[32,1], index: 6, kind: input, shape index: {}]
  %s7 = inlined_call_operand.<no memory space> [shape: f32[1,1], index: 7, kind: input, shape index: {}]
  %s8 = inlined_call_operand.hbm [shape: f32[1,384], index: 8, kind: output, shape index: {}]
  %s9 = sld [smem:[#allocation0]]
  $region54: #{tpu_custom_call.1} parent=0
    _
  %s11 = ssub.s32 1, %s9
  %s12 = scalar_select 0, %s11, %s9
  %v13 = vstv %s7
  %14 = vst [vmem:[#allocation2] sm:$0x1] %v13
  $region1: #{tpu_custom_call.1} parent=0
    #allocation3 [shape = 'u8[49152]{0}', space=vmem, size = 0xc000, scoped, tag = 'input window, operand 1, single buffered']
    #allocation4 [shape = 's32[1]{0}', space=sflag, size = 0x4, scoped, tag = 'scoped memory for tpu_custom_call.1']
    #allocation5 [shape = 's32[1]{0}', space=sflag, size = 0x4, scoped, tag = 'scoped memory for tpu_custom_call.1']
    #allocation6 [shape = 'u8[16384]{0}', space=vmem, size = 0x4000, scoped, tag = 'input window, operand 2, single buffered']
    #allocation7 [shape = 's32[1]{0}', space=sflag, size = 0x4, scoped, tag = 'scoped memory for tpu_custom_call.1']
    #allocation8 [shape = 'u8[16384]{0}', space=vmem, size = 0x4000, scoped, tag = 'input window, operand 4, single buffered']
    #allocation9 [shape = 'u8[1536]{0}', space=vmem, size = 0x800, scoped, tag = 'output window, operand 0, single buffered']
    %15 = vsyncpa [#allocation4], 0
    %16 = vsyncpa [#allocation7], 0
    %17 = vsyncpa [#allocation5], 0
    // Predicated region
    $region2: #{tpu_custom_call.1} parent=1 // pred_check
      _
    $region3: #{tpu_custom_call.1} parent=1 // pred_check_branch
      %19 = sbr.rel (0) target = $region5
    $region4: #{tpu_custom_call.1} parent=1 // pred_region
      _
    $region5: #{tpu_custom_call.1} parent=1 // pred_fallthru
      _
    // Predicated region
    $region6: #{tpu_custom_call.1} parent=1 // pred_check
      _
    $region7: #{tpu_custom_call.1} parent=1 // pred_check_branch
      %21 = sbr.rel (0) target = $region9
    $region8: #{tpu_custom_call.1} parent=1 // pred_region
      %s23 = ssub.s32 1536, 1536
      %24 = vsyncadd [#allocation4], %s23
      %s25 = sshll.u32 [#allocation3], 4
      %s26 = int_to_ptr.vmem [resolvable:$true] %s25
      %31 = dma.hbm_to_vmem [thread:$0]  %s1, 1536, %s26, [#allocation4], 384, 384, 24
    $region9: #{tpu_custom_call.1} parent=1 // pred_fallthru
      _
    // Predicated region
    $region10: #{tpu_custom_call.1} parent=1 // pred_check
      _
    $region11: #{tpu_custom_call.1} parent=1 // pred_check_branch
      %33 = sbr.rel (0) target = $region13
    $region12: #{tpu_custom_call.1} parent=1 // pred_region
      %s35 = ssub.s32 512, 512
      %36 = vsyncadd [#allocation7], %s35
      %s37 = sshll.u32 [#allocation6], 4
      %s38 = int_to_ptr.vmem [resolvable:$true] %s37
      %43 = dma.hbm_to_vmem [thread:$0]  %s2, 512, %s38, [#allocation7], 128, 128, 8
    $region13: #{tpu_custom_call.1} parent=1 // pred_fallthru
      _
    // Predicated region
    $region14: #{tpu_custom_call.1} parent=1 // pred_check
      _
    $region15: #{tpu_custom_call.1} parent=1 // pred_check_branch
      %45 = sbr.rel (0) target = $region17
    $region16: #{tpu_custom_call.1} parent=1 // pred_region
      _
    $region17: #{tpu_custom_call.1} parent=1 // pred_fallthru
      _
    // Predicated region
    $region18: #{tpu_custom_call.1} parent=1 // pred_check
      _
    $region19: #{tpu_custom_call.1} parent=1 // pred_check_branch
      %47 = sbr.rel (0) target = $region21
    $region20: #{tpu_custom_call.1} parent=1 // pred_region
      %s49 = ssub.s32 512, 512
      %50 = vsyncadd [#allocation7], %s49
      %s51 = sshll.u32 [#allocation8], 4
      %s52 = int_to_ptr.vmem [resolvable:$true] %s51
      %57 = dma.hbm_to_vmem [thread:$0]  %s4, 512, %s52, [#allocation7], 128, 128, 8
    $region21: #{tpu_custom_call.1} parent=1 // pred_fallthru
      _
    // Predicated region
    $region22: #{tpu_custom_call.1} parent=1 // pred_check
      _
    $region23: #{tpu_custom_call.1} parent=1 // pred_check_branch
      %59 = sbr.rel (0) target = $region25
    $region24: #{tpu_custom_call.1} parent=1 // pred_region
      _
    $region25: #{tpu_custom_call.1} parent=1 // pred_fallthru
      _
    // Predicated region
    $region26: #{tpu_custom_call.1} parent=1 // pred_check
      _
    $region27: #{tpu_custom_call.1} parent=1 // pred_check_branch
      %61 = sbr.rel (0) target = $region29
    $region28: #{tpu_custom_call.1} parent=1 // pred_region
      _
    $region29: #{tpu_custom_call.1} parent=1 // pred_fallthru
      _
    // Predicated region
    $region30: #{tpu_custom_call.1} parent=1 // pred_check
      _
    $region31: #{tpu_custom_call.1} parent=1 // pred_check_branch
      %63 = sbr.rel (0) target = $region33
    $region32: #{tpu_custom_call.1} parent=1 // pred_region
      _
    $region33: #{tpu_custom_call.1} parent=1 // pred_fallthru
      _
    // Predicated region
    $region34: #{tpu_custom_call.1} parent=1 // pred_check
      _
    $region35: #{tpu_custom_call.1} parent=1 // pred_check_branch
      %65 = sbr.rel (0) target = $region37
    $region36: #{tpu_custom_call.1} parent=1 // pred_region
      %66 = dma.done [#allocation4], 1536
    $region37: #{tpu_custom_call.1} parent=1 // pred_fallthru
      _
    // Predicated region
    $region38: #{tpu_custom_call.1} parent=1 // pred_check
      _
    $region39: #{tpu_custom_call.1} parent=1 // pred_check_branch
      %68 = sbr.rel (0) target = $region41
    $region40: #{tpu_custom_call.1} parent=1 // pred_region
      %69 = dma.done [#allocation7], 512
    $region41: #{tpu_custom_call.1} parent=1 // pred_fallthru
      _
    // Predicated region
    $region42: #{tpu_custom_call.1} parent=1 // pred_check
      _
    $region43: #{tpu_custom_call.1} parent=1 // pred_check_branch
      %71 = sbr.rel (0) target = $region45
    $region44: #{tpu_custom_call.1} parent=1 // pred_region
      %72 = dma.done [#allocation7], 512
    $region45: #{tpu_custom_call.1} parent=1 // pred_fallthru
      _
    %v73 = vld [vmem:[%s0] sm:$0xff]
    %v74 = vld [vmem:[%s0 + $0x8] sm:$0xff]
    %v75 = vld [vmem:[%s0 + $0x10] sm:$0xff]
    %v76 = vld [vmem:[%s0 + $0x18] sm:$0xff]
    %v77 = vld [vmem:[%s0 + $0x20] sm:$0xff]
    %v78 = vld [vmem:[%s0 + $0x28] sm:$0xff]
    %v79 = vld [vmem:[%s0 + $0x30] sm:$0xff]
    %v80 = vld [vmem:[%s0 + $0x38] sm:$0xff]
    %v81 = vld [vmem:[%s0 + $0x40] sm:$0xff]
    %v82 = vld [vmem:[%s0 + $0x48] sm:$0xff]
    %v83 = vld [vmem:[%s0 + $0x50] sm:$0xff]
    %v84 = vld [vmem:[%s0 + $0x58] sm:$0xff]
    %v85 = vld [vmem:[#allocation3] sm:$0xff]
    %v86 = vld [vmem:[#allocation3 + $0x8] sm:$0xff]
    %v87 = vld [vmem:[#allocation3 + $0x10] sm:$0xff]
    %v88 = vld [vmem:[#allocation3 + $0x18] sm:$0xff]
    %v89 = vld [vmem:[#allocation3 + $0x20] sm:$0xff]
    %v90 = vld [vmem:[#allocation3 + $0x28] sm:$0xff]
    %v91 = vld [vmem:[#allocation3 + $0x30] sm:$0xff]
    %v92 = vld [vmem:[#allocation3 + $0x38] sm:$0xff]
    %v93 = vld [vmem:[#allocation3 + $0x40] sm:$0xff]
    %v94 = vld [vmem:[#allocation3 + $0x48] sm:$0xff]
    %v95 = vld [vmem:[#allocation3 + $0x50] sm:$0xff]
    %v96 = vld [vmem:[#allocation3 + $0x58] sm:$0xff]
    %v97 = vmul.f32 %v73, %v85
    %v98 = vmul.f32 %v74, %v86
    %v99 = vmul.f32 %v75, %v87
    %v100 = vmul.f32 %v76, %v88
    %v101 = vmul.f32 %v77, %v89
    %v102 = vmul.f32 %v78, %v90
    %v103 = vmul.f32 %v79, %v91
    %v104 = vmul.f32 %v80, %v92
    %v105 = vmul.f32 %v81, %v93
    %v106 = vmul.f32 %v82, %v94
    %v107 = vmul.f32 %v83, %v95
    %v108 = vmul.f32 %v84, %v96
    %v109 = vld [vmem:[#allocation6] sm:$0xff]
    %v110 = vld [vmem:[#allocation6 + $0x8] sm:$0xff]
    %v111 = vld [vmem:[#allocation6 + $0x10] sm:$0xff]
    %v112 = vld [vmem:[#allocation6 + $0x18] sm:$0xff]
    %v113 = vld [vmem:[%s3] sm:$0xff]
    %v114 = vld [vmem:[%s3 + $0x8] sm:$0xff]
    %v115 = vld [vmem:[%s3 + $0x10] sm:$0xff]
    %v116 = vld [vmem:[%s3 + $0x18] sm:$0xff]
    %118 = vset.pattern.permute.xlu0 0
    %119 = vperm.xlu0 %118, %v113
    %v120 = vpop.permute.xlu0 %119
    %123 = vset.pattern.permute.xlu0 0
    %124 = vperm.xlu0 %123, %v114
    %v125 = vpop.permute.xlu0 %124
    %128 = vset.pattern.permute.xlu0 0
    %129 = vperm.xlu0 %128, %v115
    %v130 = vpop.permute.xlu0 %129
    %133 = vset.pattern.permute.xlu0 0
    %134 = vperm.xlu0 %133, %v116
    %v135 = vpop.permute.xlu0 %134
    %vm137 = vcmask 261120
    %v139 = vsel %vm137, %v109, 0
    %v142 = vsel %vm137, %v110, 0
    %v145 = vsel %vm137, %v111, 0
    %v148 = vsel %vm137, %v112, 0
    %150 = vmatprep.subr.mxu0 0.0
    %151 = vmatpush1.msra.mxu0 0.0
    %152 = vmatprep.subr.mxu0 0.0
    %153 = vmatpush1.msra.mxu0 0.0
    %154 = vmatprep.subr.mxu0 0.0
    %155 = vmatpush1.msra.mxu0 0.0
    %156 = vmatprep.subr.mxu0 0.0
    %157 = vmatpush1.msra.mxu0 0.0
    %158 = vmatprep.subr.mxu0 0.0
    %159 = vmatpush1.msra.mxu0 0.0
    %160 = vmatprep.subr.mxu0 0.0
    %161 = vmatpush1.msra.mxu0 0.0
    %162 = vmatprep.subr.mxu0 0.0
    %163 = vmatpush1.msra.mxu0 0.0
    %164 = vmatprep.subr.mxu0 0.0
    %165 = vmatpush1.msra.mxu0 0.0
    %166 = vmatprep.subr.mxu0 0.0
    %167 = vmatpush1.msra.mxu0 0.0
    %168 = vmatprep.subr.mxu0 0.0
    %169 = vmatpush1.msra.mxu0 0.0
    %170 = vmatprep.subr.mxu0 0.0
    %171 = vmatpush1.msra.mxu0 0.0
    %172 = vmatprep.subr.mxu0 0.0
    %173 = vmatpush1.msra.mxu0 0.0
    %174 = vmatprep.subr.mxu0 %v107
    %175 = vmatpush1.msra.mxu0 %v106
    %176 = vmatprep.subr.mxu0 %v104
    %177 = vmatpush1.msra.mxu0 %v103
    %178 = vmatprep.subr.mxu0 %v101
    %179 = vmatpush1.msra.mxu0 %v100
    %180 = vmatprep.subr.mxu0 %v98
    %181 = vmatpush1.msra.mxu0 %v97
    %182 = vmatprep.subr.mxu0 0.0
    %183 = vmatpush2.msra.mxu0 0.0
    %184 = vmatprep.subr.mxu0 0.0
    %185 = vmatpush2.msra.mxu0 0.0
    %186 = vmatprep.subr.mxu0 0.0
    %187 = vmatpush2.msra.mxu0 0.0
    %188 = vmatprep.subr.mxu0 0.0
    %189 = vmatpush2.msra.mxu0 0.0
    %190 = vmatprep.subr.mxu0 0.0
    %191 = vmatpush2.msra.mxu0 0.0
    %192 = vmatprep.subr.mxu0 0.0
    %193 = vmatpush2.msra.mxu0 0.0
    %194 = vmatprep.subr.mxu0 0.0
    %195 = vmatpush2.msra.mxu0 0.0
    %196 = vmatprep.subr.mxu0 0.0
    %197 = vmatpush2.msra.mxu0 0.0
    %198 = vmatprep.subr.mxu0 0.0
    %199 = vmatpush2.msra.mxu0 0.0
    %200 = vmatprep.subr.mxu0 0.0
    %201 = vmatpush2.msra.mxu0 0.0
    %202 = vmatprep.subr.mxu0 0.0
    %203 = vmatpush2.msra.mxu0 0.0
    %204 = vmatprep.subr.mxu0 0.0
    %205 = vmatpush2.msra.mxu0 0.0
    %206 = vmatprep.subr.mxu0 0.0
    %207 = vmatpush2.msra.mxu0 0.0
    %208 = vmatprep.subr.mxu0 0.0
    %209 = vmatpush2.msra.mxu0 0.0
    %210 = vmatprep.subr.mxu0 0.0
    %211 = vmatpush2.msra.mxu0 0.0
    %212 = vmatprep.subr.mxu0 0.0
    %213 = vmatpush2.msra.mxu0 0.0
    %214 = vmatprep.mubr.f32.mxu0 0.0
    %215 = vmatmul.mubr.f32.gmra.mxu0 %v139
    %v216 = vpop.f32.mrf.mxu0
    %v217 = vadd.f32 %v120, %v216
    %v218 = vpop.f32.mrf.mxu0
    %v219 = vadd.f32 %v120, %v218
    %220 = vmatprep.mubr.f32.mxu0 0.0
    %221 = vmatmul.mubr.f32.gmra.mxu0 %v142
    %v222 = vpop.f32.mrf.mxu0
    %v223 = vadd.f32 %v125, %v222
    %v224 = vpop.f32.mrf.mxu0
    %v225 = vadd.f32 %v125, %v224
    %226 = vmatprep.mubr.f32.mxu0 0.0
    %227 = vmatmul.mubr.f32.gmra.mxu0 %v145
    %v228 = vpop.f32.mrf.mxu0
    %v229 = vadd.f32 %v130, %v228
    %v230 = vpop.f32.mrf.mxu0
    %v231 = vadd.f32 %v130, %v230
    %232 = vmatprep.mubr.f32.mxu0 0.0
    %233 = vmatmul.mubr.f32.gmra.mxu0 %v148
    %v234 = vpop.f32.mrf.mxu0
    %v235 = vadd.f32 %v135, %v234
    %v236 = vpop.f32.mrf.mxu0
    %v237 = vadd.f32 %v135, %v236
    %238 = vdwg.mxu0
    %239 = vmatprep.subr.mxu0 0.0
    %240 = vmatpush1.msra.mxu0 0.0
    %241 = vmatprep.subr.mxu0 0.0
    %242 = vmatpush1.msra.mxu0 0.0
    %243 = vmatprep.subr.mxu0 0.0
    %244 = vmatpush1.msra.mxu0 0.0
    %245 = vmatprep.subr.mxu0 0.0
    %246 = vmatpush1.msra.mxu0 0.0
    %247 = vmatprep.subr.mxu0 0.0
    %248 = vmatpush1.msra.mxu0 0.0
    %249 = vmatprep.subr.mxu0 0.0
    %250 = vmatpush1.msra.mxu0 0.0
    %251 = vmatprep.subr.mxu0 0.0
    %252 = vmatpush1.msra.mxu0 0.0
    %253 = vmatprep.subr.mxu0 0.0
    %254 = vmatpush1.msra.mxu0 0.0
    %255 = vmatprep.subr.mxu0 0.0
    %256 = vmatpush1.msra.mxu0 0.0
    %257 = vmatprep.subr.mxu0 0.0
    %258 = vmatpush1.msra.mxu0 0.0
    %259 = vmatprep.subr.mxu0 0.0
    %260 = vmatpush1.msra.mxu0 0.0
    %261 = vmatprep.subr.mxu0 0.0
    %262 = vmatpush1.msra.mxu0 0.0
    %263 = vmatprep.subr.mxu0 0.0
    %264 = vmatpush1.msra.mxu0 %v108
    %265 = vmatprep.subr.mxu0 0.0
    %266 = vmatpush1.msra.mxu0 %v105
    %267 = vmatprep.subr.mxu0 0.0
    %268 = vmatpush1.msra.mxu0 %v102
    %269 = vmatprep.subr.mxu0 0.0
    %270 = vmatpush1.msra.mxu0 %v99
    %271 = vmatprep.subr.mxu0 0.0
    %272 = vmatpush2.msra.mxu0 0.0
    %273 = vmatprep.subr.mxu0 0.0
    %274 = vmatpush2.msra.mxu0 0.0
    %275 = vmatprep.subr.mxu0 0.0
    %276 = vmatpush2.msra.mxu0 0.0
    %277 = vmatprep.subr.mxu0 0.0
    %278 = vmatpush2.msra.mxu0 0.0
    %279 = vmatprep.subr.mxu0 0.0
    %280 = vmatpush2.msra.mxu0 0.0
    %281 = vmatprep.subr.mxu0 0.0
    %282 = vmatpush2.msra.mxu0 0.0
    %283 = vmatprep.subr.mxu0 0.0
    %284 = vmatpush2.msra.mxu0 0.0
    %285 = vmatprep.subr.mxu0 0.0
    %286 = vmatpush2.msra.mxu0 0.0
    %287 = vmatprep.subr.mxu0 0.0
    %288 = vmatpush2.msra.mxu0 0.0
    %289 = vmatprep.subr.mxu0 0.0
    %290 = vmatpush2.msra.mxu0 0.0
    %291 = vmatprep.subr.mxu0 0.0
    %292 = vmatpush2.msra.mxu0 0.0
    %293 = vmatprep.subr.mxu0 0.0
    %294 = vmatpush2.msra.mxu0 0.0
    %295 = vmatprep.subr.mxu0 0.0
    %296 = vmatpush2.msra.mxu0 0.0
    %297 = vmatprep.subr.mxu0 0.0
    %298 = vmatpush2.msra.mxu0 0.0
    %299 = vmatprep.subr.mxu0 0.0
    %300 = vmatpush2.msra.mxu0 0.0
    %301 = vmatprep.subr.mxu0 0.0
    %302 = vmatpush2.msra.mxu0 0.0
    %303 = vmatprep.mubr.f32.mxu0 0.0
    %304 = vmatmul.mubr.f32.gmra.mxu0 %v139
    %v305 = vpop.f32.mrf.mxu0
    %v306 = vadd.f32 %v120, %v305
    %v307 = vpop.f32.mrf.mxu0
    %308 = vmatprep.mubr.f32.mxu0 0.0
    %309 = vmatmul.mubr.f32.gmra.mxu0 %v142
    %v310 = vpop.f32.mrf.mxu0
    %v311 = vadd.f32 %v125, %v310
    %v312 = vpop.f32.mrf.mxu0
    %313 = vmatprep.mubr.f32.mxu0 0.0
    %314 = vmatmul.mubr.f32.gmra.mxu0 %v145
    %v315 = vpop.f32.mrf.mxu0
    %v316 = vadd.f32 %v130, %v315
    %v317 = vpop.f32.mrf.mxu0
    %318 = vmatprep.mubr.f32.mxu0 0.0
    %319 = vmatmul.mubr.f32.gmra.mxu0 %v148
    %v320 = vpop.f32.mrf.mxu0
    %v321 = vadd.f32 %v135, %v320
    %v322 = vpop.f32.mrf.mxu0
    %323 = vdwg.mxu0
    %v324 = vmax.f32 %v217, 0.0
    %v325 = vmax.f32 %v219, 0.0
    %v326 = vmax.f32 %v306, 0.0
    %v327 = vmax.f32 %v223, 0.0
    %v328 = vmax.f32 %v225, 0.0
    %v329 = vmax.f32 %v311, 0.0
    %v330 = vmax.f32 %v229, 0.0
    %v331 = vmax.f32 %v231, 0.0
    %v332 = vmax.f32 %v316, 0.0
    %v333 = vmax.f32 %v235, 0.0
    %v334 = vmax.f32 %v237, 0.0
    %v335 = vmax.f32 %v321, 0.0
    %v336 = vld [vmem:[#allocation8] sm:$0xff]
    %v337 = vld [vmem:[#allocation8 + $0x8] sm:$0xff]
    %v338 = vld [vmem:[#allocation8 + $0x10] sm:$0xff]
    %v339 = vld [vmem:[#allocation8 + $0x18] sm:$0xff]
    %v340 = vld [vmem:[%s5] sm:$0xff]
    %v341 = vld [vmem:[%s5 + $0x8] sm:$0xff]
    %v342 = vld [vmem:[%s5 + $0x10] sm:$0xff]
    %v343 = vld [vmem:[%s5 + $0x18] sm:$0xff]
    %345 = vset.pattern.permute.xlu0 0
    %346 = vperm.xlu0 %345, %v340
    %v347 = vpop.permute.xlu0 %346
    %350 = vset.pattern.permute.xlu0 0
    %351 = vperm.xlu0 %350, %v341
    %v352 = vpop.permute.xlu0 %351
    %355 = vset.pattern.permute.xlu0 0
    %356 = vperm.xlu0 %355, %v342
    %v357 = vpop.permute.xlu0 %356
    %360 = vset.pattern.permute.xlu0 0
    %361 = vperm.xlu0 %360, %v343
    %v362 = vpop.permute.xlu0 %361
    %v365 = vsel %vm137, %v336, 0
    %v368 = vsel %vm137, %v337, 0
    %v371 = vsel %vm137, %v338, 0
    %v374 = vsel %vm137, %v339, 0
    %376 = vmatprep.subr.mxu0 0.0
    %377 = vmatpush1.msra.mxu0 0.0
    %378 = vmatprep.subr.mxu0 0.0
    %379 = vmatpush1.msra.mxu0 0.0
    %380 = vmatprep.subr.mxu0 0.0
    %381 = vmatpush1.msra.mxu0 0.0
    %382 = vmatprep.subr.mxu0 0.0
    %383 = vmatpush1.msra.mxu0 0.0
    %384 = vmatprep.subr.mxu0 0.0
    %385 = vmatpush1.msra.mxu0 0.0
    %386 = vmatprep.subr.mxu0 0.0
    %387 = vmatpush1.msra.mxu0 0.0
    %388 = vmatprep.subr.mxu0 0.0
    %389 = vmatpush1.msra.mxu0 0.0
    %390 = vmatprep.subr.mxu0 0.0
    %391 = vmatpush1.msra.mxu0 0.0
    %392 = vmatprep.subr.mxu0 0.0
    %393 = vmatpush1.msra.mxu0 0.0
    %394 = vmatprep.subr.mxu0 0.0
    %395 = vmatpush1.msra.mxu0 0.0
    %396 = vmatprep.subr.mxu0 0.0
    %397 = vmatpush1.msra.mxu0 0.0
    %398 = vmatprep.subr.mxu0 0.0
    %399 = vmatpush1.msra.mxu0 0.0
    %400 = vmatprep.subr.mxu0 %v334
    %401 = vmatpush1.msra.mxu0 %v333
    %402 = vmatprep.subr.mxu0 %v331
    %403 = vmatpush1.msra.mxu0 %v330
    %404 = vmatprep.subr.mxu0 %v328
    %405 = vmatpush1.msra.mxu0 %v327
    %406 = vmatprep.subr.mxu0 %v325
    %407 = vmatpush1.msra.mxu0 %v324
    %408 = vmatprep.subr.mxu0 0.0
    %409 = vmatpush2.msra.mxu0 0.0
    %410 = vmatprep.subr.mxu0 0.0
    %411 = vmatpush2.msra.mxu0 0.0
    %412 = vmatprep.subr.mxu0 0.0
    %413 = vmatpush2.msra.mxu0 0.0
    %414 = vmatprep.subr.mxu0 0.0
    %415 = vmatpush2.msra.mxu0 0.0
    %416 = vmatprep.subr.mxu0 0.0
    %417 = vmatpush2.msra.mxu0 0.0
    %418 = vmatprep.subr.mxu0 0.0
    %419 = vmatpush2.msra.mxu0 0.0
    %420 = vmatprep.subr.mxu0 0.0
    %421 = vmatpush2.msra.mxu0 0.0
    %422 = vmatprep.subr.mxu0 0.0
    %423 = vmatpush2.msra.mxu0 0.0
    %424 = vmatprep.subr.mxu0 0.0
    %425 = vmatpush2.msra.mxu0 0.0
    %426 = vmatprep.subr.mxu0 0.0
    %427 = vmatpush2.msra.mxu0 0.0
    %428 = vmatprep.subr.mxu0 0.0
    %429 = vmatpush2.msra.mxu0 0.0
    %430 = vmatprep.subr.mxu0 0.0
    %431 = vmatpush2.msra.mxu0 0.0
    %432 = vmatprep.subr.mxu0 0.0
    %433 = vmatpush2.msra.mxu0 0.0
    %434 = vmatprep.subr.mxu0 0.0
    %435 = vmatpush2.msra.mxu0 0.0
    %436 = vmatprep.subr.mxu0 0.0
    %437 = vmatpush2.msra.mxu0 0.0
    %438 = vmatprep.subr.mxu0 0.0
    %439 = vmatpush2.msra.mxu0 0.0
    %440 = vmatprep.mubr.f32.mxu0 0.0
    %441 = vmatmul.mubr.f32.gmra.mxu0 %v365
    %v442 = vpop.f32.mrf.mxu0
    %v443 = vadd.f32 %v347, %v442
    %v444 = vpop.f32.mrf.mxu0
    %v445 = vadd.f32 %v347, %v444
    %446 = vmatprep.mubr.f32.mxu0 0.0
    %447 = vmatmul.mubr.f32.gmra.mxu0 %v368
    %v448 = vpop.f32.mrf.mxu0
    %v449 = vadd.f32 %v352, %v448
    %v450 = vpop.f32.mrf.mxu0
    %v451 = vadd.f32 %v352, %v450
    %452 = vmatprep.mubr.f32.mxu0 0.0
    %453 = vmatmul.mubr.f32.gmra.mxu0 %v371
    %v454 = vpop.f32.mrf.mxu0
    %v455 = vadd.f32 %v357, %v454
    %v456 = vpop.f32.mrf.mxu0
    %v457 = vadd.f32 %v357, %v456
    %458 = vmatprep.mubr.f32.mxu0 0.0
    %459 = vmatmul.mubr.f32.gmra.mxu0 %v374
    %v460 = vpop.f32.mrf.mxu0
    %v461 = vadd.f32 %v362, %v460
    %v462 = vpop.f32.mrf.mxu0
    %v463 = vadd.f32 %v362, %v462
    %464 = vdwg.mxu0
    %465 = vmatprep.subr.mxu0 0.0
    %466 = vmatpush1.msra.mxu0 0.0
    %467 = vmatprep.subr.mxu0 0.0
    %468 = vmatpush1.msra.mxu0 0.0
    %469 = vmatprep.subr.mxu0 0.0
    %470 = vmatpush1.msra.mxu0 0.0
    %471 = vmatprep.subr.mxu0 0.0
    %472 = vmatpush1.msra.mxu0 0.0
    %473 = vmatprep.subr.mxu0 0.0
    %474 = vmatpush1.msra.mxu0 0.0
    %475 = vmatprep.subr.mxu0 0.0
    %476 = vmatpush1.msra.mxu0 0.0
    %477 = vmatprep.subr.mxu0 0.0
    %478 = vmatpush1.msra.mxu0 0.0
    %479 = vmatprep.subr.mxu0 0.0
    %480 = vmatpush1.msra.mxu0 0.0
    %481 = vmatprep.subr.mxu0 0.0
    %482 = vmatpush1.msra.mxu0 0.0
    %483 = vmatprep.subr.mxu0 0.0
    %484 = vmatpush1.msra.mxu0 0.0
    %485 = vmatprep.subr.mxu0 0.0
    %486 = vmatpush1.msra.mxu0 0.0
    %487 = vmatprep.subr.mxu0 0.0
    %488 = vmatpush1.msra.mxu0 0.0
    %489 = vmatprep.subr.mxu0 0.0
    %490 = vmatpush1.msra.mxu0 %v335
    %491 = vmatprep.subr.mxu0 0.0
    %492 = vmatpush1.msra.mxu0 %v332
    %493 = vmatprep.subr.mxu0 0.0
    %494 = vmatpush1.msra.mxu0 %v329
    %495 = vmatprep.subr.mxu0 0.0
    %496 = vmatpush1.msra.mxu0 %v326
    %497 = vmatprep.subr.mxu0 0.0
    %498 = vmatpush2.msra.mxu0 0.0
    %499 = vmatprep.subr.mxu0 0.0
    %500 = vmatpush2.msra.mxu0 0.0
    %501 = vmatprep.subr.mxu0 0.0
    %502 = vmatpush2.msra.mxu0 0.0
    %503 = vmatprep.subr.mxu0 0.0
    %504 = vmatpush2.msra.mxu0 0.0
    %505 = vmatprep.subr.mxu0 0.0
    %506 = vmatpush2.msra.mxu0 0.0
    %507 = vmatprep.subr.mxu0 0.0
    %508 = vmatpush2.msra.mxu0 0.0
    %509 = vmatprep.subr.mxu0 0.0
    %510 = vmatpush2.msra.mxu0 0.0
    %511 = vmatprep.subr.mxu0 0.0
    %512 = vmatpush2.msra.mxu0 0.0
    %513 = vmatprep.subr.mxu0 0.0
    %514 = vmatpush2.msra.mxu0 0.0
    %515 = vmatprep.subr.mxu0 0.0
    %516 = vmatpush2.msra.mxu0 0.0
    %517 = vmatprep.subr.mxu0 0.0
    %518 = vmatpush2.msra.mxu0 0.0
    %519 = vmatprep.subr.mxu0 0.0
    %520 = vmatpush2.msra.mxu0 0.0
    %521 = vmatprep.subr.mxu0 0.0
    %522 = vmatpush2.msra.mxu0 0.0
    %523 = vmatprep.subr.mxu0 0.0
    %524 = vmatpush2.msra.mxu0 0.0
    %525 = vmatprep.subr.mxu0 0.0
    %526 = vmatpush2.msra.mxu0 0.0
    %527 = vmatprep.subr.mxu0 0.0
    %528 = vmatpush2.msra.mxu0 0.0
    %529 = vmatprep.mubr.f32.mxu0 0.0
    %530 = vmatmul.mubr.f32.gmra.mxu0 %v365
    %v531 = vpop.f32.mrf.mxu0
    %v532 = vadd.f32 %v347, %v531
    %v533 = vpop.f32.mrf.mxu0
    %534 = vmatprep.mubr.f32.mxu0 0.0
    %535 = vmatmul.mubr.f32.gmra.mxu0 %v368
    %v536 = vpop.f32.mrf.mxu0
    %v537 = vadd.f32 %v352, %v536
    %v538 = vpop.f32.mrf.mxu0
    %539 = vmatprep.mubr.f32.mxu0 0.0
    %540 = vmatmul.mubr.f32.gmra.mxu0 %v371
    %v541 = vpop.f32.mrf.mxu0
    %v542 = vadd.f32 %v357, %v541
    %v543 = vpop.f32.mrf.mxu0
    %544 = vmatprep.mubr.f32.mxu0 0.0
    %545 = vmatmul.mubr.f32.gmra.mxu0 %v374
    %v546 = vpop.f32.mrf.mxu0
    %v547 = vadd.f32 %v362, %v546
    %v548 = vpop.f32.mrf.mxu0
    %549 = vdwg.mxu0
    %v550 = vmax.f32 %v443, 0.0
    %v551 = vmax.f32 %v445, 0.0
    %v552 = vmax.f32 %v532, 0.0
    %v553 = vmax.f32 %v449, 0.0
    %v554 = vmax.f32 %v451, 0.0
    %v555 = vmax.f32 %v537, 0.0
    %v556 = vmax.f32 %v455, 0.0
    %v557 = vmax.f32 %v457, 0.0
    %v558 = vmax.f32 %v542, 0.0
    %v559 = vmax.f32 %v461, 0.0
    %v560 = vmax.f32 %v463, 0.0
    %v561 = vmax.f32 %v547, 0.0
    %v562 = vld [vmem:[%s6] sm:$0xff]
    %v563 = vld [vmem:[%s6 + $0x8] sm:$0xff]
    %v564 = vld [vmem:[%s6 + $0x10] sm:$0xff]
    %v565 = vld [vmem:[%s6 + $0x18] sm:$0xff]
    %v566 = vld [vmem:[#allocation2] sm:$0x1]
    %568 = vset.pattern.permute.xlu0 0
    %569 = vperm.xlu0 %568, %v562
    %v570 = vpop.permute.xlu0 %569
    %573 = vset.pattern.permute.xlu0 0
    %574 = vperm.xlu0 %573, %v563
    %v575 = vpop.permute.xlu0 %574
    %578 = vset.pattern.permute.xlu0 0
    %579 = vperm.xlu0 %578, %v564
    %v580 = vpop.permute.xlu0 %579
    %583 = vset.pattern.permute.xlu0 0
    %584 = vperm.xlu0 %583, %v565
    %v585 = vpop.permute.xlu0 %584
    %v587 = vmul.f32 %v550, %v570
    %v588 = vmul.f32 %v551, %v570
    %v589 = vmul.f32 %v552, %v570
    %v590 = vmul.f32 %v553, %v575
    %v591 = vmul.f32 %v554, %v575
    %v592 = vmul.f32 %v555, %v575
    %v593 = vmul.f32 %v556, %v580
    %v594 = vmul.f32 %v557, %v580
    %v595 = vmul.f32 %v558, %v580
    %v596 = vmul.f32 %v559, %v585
    %v597 = vmul.f32 %v560, %v585
    %v598 = vmul.f32 %v561, %v585
    %v599 = vadd.f32 %v587, %v590
    %v600 = vadd.f32 %v599, %v593
    %v601 = vadd.f32 %v600, %v596
    %v602 = vrot.slane %v601, 4
    %v603 = vadd.f32 %v601, %v602
    %v604 = vrot.slane %v603, 2
    %v605 = vadd.f32 %v603, %v604
    %v606 = vrot.slane %v605, 1
    %v607 = vadd.f32 %v605, %v606
    %v608 = vadd.f32 %v588, %v591
    %v609 = vadd.f32 %v608, %v594
    %v610 = vadd.f32 %v609, %v597
    %v611 = vrot.slane %v610, 4
    %v612 = vadd.f32 %v610, %v611
    %v613 = vrot.slane %v612, 2
    %v614 = vadd.f32 %v612, %v613
    %v615 = vrot.slane %v614, 1
    %v616 = vadd.f32 %v614, %v615
    %v617 = vadd.f32 %v589, %v592
    %v618 = vadd.f32 %v617, %v595
    %v619 = vadd.f32 %v618, %v598
    %v620 = vrot.slane %v619, 4
    %v621 = vadd.f32 %v619, %v620
    %v622 = vrot.slane %v621, 2
    %v623 = vadd.f32 %v621, %v622
    %v624 = vrot.slane %v623, 1
    %v625 = vadd.f32 %v623, %v624
    %627 = vset.pattern.permute.xlu0 0
    %628 = vperm.xlu0 %627, %v566
    %v629 = vpop.permute.xlu0 %628
    %v631 = vlaneseq
    %v632 = vshrl.u32 %v631, 7
    %v633 = vsub.s32 0, %v632
    %v634 = vrot.slane %v629, %v633
    %v635 = vadd.f32 %v607, %v634
    %v636 = vadd.f32 %v616, %v634
    %v637 = vadd.f32 %v625, %v634
    %v638 = vxor.u32 %v635, 2147483648
    %v639 = vxor.u32 %v636, 2147483648
    %v640 = vxor.u32 %v637, 2147483648
    %v641 = vmul.f32 %v638, 1.442695
    %v642 = vpow.pop %v641
    %v643 = vmul.f32 %v639, 1.442695
    %v644 = vpow.pop %v643
    %v645 = vmul.f32 %v640, 1.442695
    %v646 = vpow.pop %v645
    %v647 = vadd.f32 %v642, 1.0
    %v648 = vadd.f32 %v644, 1.0
    %v649 = vadd.f32 %v646, 1.0
    %v650 = vrcp.pop %v647
    %v651 = vmul.f32 1.0, %v650
    %v652 = vrcp.pop %v648
    %v653 = vmul.f32 1.0, %v652
    %v654 = vrcp.pop %v649
    %v655 = vmul.f32 1.0, %v654
    %v659 = vcombine.low %v651, %v653
    %v661 = vunpack.c.l.s4 1966171168
    %v662 = vunpack.c.0.s8 %v661
    %v663 = vlaneseq
    %v664 = vshrl.u32 %v663, 7
    %v665 = vsub.s32 %v662, %v664
    %v666 = vrot.slane %v659, %v665
    %v668 = vunpack.c.l.s4 1966171168
    %v669 = vunpack.c.0.s8 %v668
    %v670 = vlaneseq
    %v671 = vshrl.u32 %v670, 7
    %v672 = vsub.s32 %v669, %v671
    %v673 = vrot.slane %v655, %v672
    %v674 = vcombine.low %v666, %v673
    %v676 = vunpack.c.l.s4 1966171168
    %v677 = vunpack.c.0.s8 %v676
    %v678 = vlaneseq
    %v679 = vshrl.u32 %v678, 7
    %v680 = vsub.s32 %v677, %v679
    %v681 = vrot.slane %v674, %v680
    %v683 = vlaneseq
    %vm684 = vcmp.ge.s32.totalorder %v683, 0
    %vm685 = vcmp.lt.s32.totalorder %v683, 384
    %vm686 = vmand %vm684, %vm685
    %687 = vst.msk [vmem:[#allocation9] sm:$0x7] %vm686, %v681
    // Predicated region
    $region46: #{tpu_custom_call.1} parent=1 // pred_check
      _
    $region47: #{tpu_custom_call.1} parent=1 // pred_check_branch
      %689 = sbr.rel (0) target = $region49
    $region48: #{tpu_custom_call.1} parent=1 // pred_region
      %s691 = ssub.s32 48, 48
      %692 = vsyncadd [#allocation5], %s691
      %s694 = sshll.u32 [#allocation9], 4
      %s695 = int_to_ptr.vmem [resolvable:$true] %s694
      %697 = dma.vmem_to_hbm [thread:$0]  %s695, 48, %s8, [#allocation5]
    $region49: #{tpu_custom_call.1} parent=1 // pred_fallthru
      _
    // Predicated region
    $region50: #{tpu_custom_call.1} parent=1 // pred_check
      _
    $region51: #{tpu_custom_call.1} parent=1 // pred_check_branch
      %699 = sbr.rel (0) target = $region53
    $region52: #{tpu_custom_call.1} parent=1 // pred_region
      %700 = dma.done [#allocation5], 48
    $region53: #{tpu_custom_call.1} parent=1 // pred_fallthru
      _
    %701 = vsyncpa [#allocation4], 1
    %702 = vsyncpa [#allocation7], 1
    %703 = vsyncpa [#allocation5], 1

</llo_original>
